<compile_context>
chip_gen: v5e
topology: v5e:2x2
jax: 0.10.0
libtpu: 0.0.40
codegen_flags: <defaults>
</compile_context>

<pallas_src>
import functools

import jax
import jax.numpy as jnp
from jax.experimental import pallas as pl
from jax.experimental.pallas import tpu as pltpu

_LANE = 128


def _cost32(g, a):
    g = g.astype(jnp.float32)
    a = a.astype(jnp.float32)
    return jnp.log(g) + jnp.log(1.0 - a)


def _device_kind():
    try:
        return jax.devices()[0].device_kind.lower()
    except Exception:  # defensive: no initialized backend, etc.
        return ""


def _make_in_spec(block_shape, index_map, num_buffers):
    # Triple-buffer the streamed inputs so HBM stays continuously busy between
    # back-to-back copies; fall back to the default double-buffering if this
    # JAX version's BlockSpec does not accept pipeline_mode.
    if num_buffers > 2:
        try:
            return pl.BlockSpec(block_shape, index_map,
                                pipeline_mode=pl.Buffered(num_buffers))
        except (TypeError, AttributeError):
            pass
    return pl.BlockSpec(block_shape, index_map)


def _cycle_cond_sum_kernel(g_ref, a_ref, o_ref, *, valid_rows, tile_rows,
                           steps_per_chunk, needs_mask):
    # Grid = (num_chunks ["parallel"], steps ["arbitrary"]). The output block
    # (1, 8, 128) is indexed only by the chunk id, so it stays resident across
    # the inner reduction axis and acts as the accumulator.
    j = pl.program_id(1)

    @pl.when(j == 0)
    def _():
        o_ref[...] = jnp.zeros_like(o_ref)

    g = g_ref[...].astype(jnp.float32)
    a = a_ref[...].astype(jnp.float32)
    # Exact two-log form to match torch.log(g) + torch.log(1 - a). A fused
    # log(g * (1 - a)) would halve EUP work (only relevant if a v7x bundle
    # dump shows the EUP slot binding) but can underflow to -inf, so keep it.
    cost = jnp.log(g) + jnp.log(1.0 - a)

    def _accumulate(c):
        # (tile, 128) -> (8, 128) with VPU adds only. The reshape splits the
        # sublane axis on an (8, 128) tile boundary, so it is layout
        # preserving (no materialized VMEM copy, no per-step XLU reduce).
        o_ref[...] += jnp.sum(c.reshape(tile_rows // 8, 8, _LANE), axis=0)[None]

    if not needs_mask:
        _accumulate(cost)
    else:
        # Gate the row mask on a scalar predicate: only the partial tail block
        # (and any clamped duplicate block from the chunk split) pays for the
        # iota + compare + select; interior blocks take the unmasked path.
        step = pl.program_id(0) * steps_per_chunk + j
        block_is_full = (step + 1) * tile_rows <= valid_rows

        @pl.when(block_is_full)
        def _():
            _accumulate(cost)

        @pl.when(jnp.logical_not(block_is_full))
        def _():
            row = step * tile_rows + jax.lax.broadcasted_iota(
                jnp.int32, cost.shape, 0)
            # Keep this a select (NOT a multiply-by-mask): rows past the array
            # end hold undefined data that may be NaN/Inf after the logs.
            _accumulate(jnp.where(row < valid_rows, cost, 0.0))


def cycle_cond_loss(d_ground, d_approx, *, tile_rows=None, num_buffers=3):
    """-(log(d_ground) + log(1 - d_approx)).mean() via a Pallas TPU kernel."""
    assert d_ground.shape == d_approx.shape, (d_ground.shape, d_approx.shape)
    n = d_ground.size

    flat_g = d_ground.reshape(-1)
    flat_a = d_approx.reshape(-1)

    itemsize = jnp.dtype(d_ground.dtype).itemsize
    sub = {4: 8, 2: 16, 1: 32}.get(itemsize, 8)   # sublane granularity

    rows = n // _LANE
    rem = n - rows * _LANE

    # Tiny inputs: below one (sub, 128) tile a kernel launch is not worth it.
    if rows < sub:
        return -jnp.mean(_cost32(flat_g, flat_a))

    # Ragged tail (< 128 elements): fold it in with plain JAX instead of
    # concatenating a neutral pad onto the whole array (which doubled HBM
    # traffic for every ragged input).
    tail_sum = jnp.float32(0.0)
    if rem:
        tail_sum = jnp.sum(_cost32(flat_g[rows * _LANE:],
                                   flat_a[rows * _LANE:]))
        flat_g = flat_g[:rows * _LANE]
        flat_a = flat_a[:rows * _LANE]
    g2 = flat_g.reshape(rows, _LANE)   # contiguous reshape: no copy when aligned
    a2 = flat_a.reshape(rows, _LANE)

    kind = _device_kind()
    two_tensorcores = "7" in kind      # v7x: 2 TensorCores per chip

    # Bandwidth/dtype-aware block size: target ~2 MiB per input per grid step
    # on v5e/v6e and ~4 MiB on v7x, i.e. 4-8 MiB of HBM traffic per step.
    if tile_rows is None:
        per_input_block_bytes = (4 << 20) if two_tensorcores else (2 << 20)
        tile_rows = max(sub, per_input_block_bytes // (_LANE * itemsize))

    # Clamp the tile so the pipeline-buffer footprint
    # (2 inputs x num_buffers x tile x 128 x itemsize) stays <= 32 MiB — safe
    # even on v7x (64 MiB physical VMEM) with headroom for internal scratch.
    max_tile = (32 << 20) // (2 * max(num_buffers, 2) * _LANE * itemsize)
    tile = max(sub, (min(tile_rows, rows, max_tile) // sub) * sub)
    total_blocks = pl.cdiv(rows, tile)

    # Split the reduction over a leading "parallel" axis only on chips with
    # two TensorCores; on single-core chips (v5e/v6e) the split would just
    # force mask work and a possible duplicate-block re-read for nothing.
    num_chunks = 2 if (two_tensorcores and total_blocks >= 2) else 1
    steps = pl.cdiv(total_blocks, num_chunks)
    needs_mask = (num_chunks * steps * tile) != rows
    last_block = total_blocks - 1

    # Triple-buffering only pays off once the grid is long enough.
    use_buffered = num_buffers > 2 and num_chunks * steps >= num_buffers
    bufs = num_buffers if use_buffered else 2

    # Scoped-VMEM request from the real buffer footprint (+8 MiB headroom for
    # the output block and internal scratch), capped at 40 MiB (v7x: 64 MiB
    # physical / 32 MiB scoped default; v5e scoped default is only 16 MiB).
    buf_bytes = 2 * bufs * tile * _LANE * itemsize
    vmem_limit = None
    if buf_bytes + (8 << 20) > (16 << 20):
        vmem_limit = int(min(buf_bytes + (8 << 20), 40 << 20))

    kernel = functools.partial(
        _cycle_cond_sum_kernel,
        valid_rows=rows,
        tile_rows=tile,
        steps_per_chunk=steps,
        needs_mask=needs_mask,
    )

    def _in_index_map(p, j):
        # Clamp so no block origin falls outside the array; the (gated) row
        # mask zeroes any clamped-duplicate / out-of-range rows.
        return (jnp.minimum(p * steps + j, last_block), 0)

    in_specs = [
        _make_in_spec((tile, _LANE), _in_index_map, bufs),
        _make_in_spec((tile, _LANE), _in_index_map, bufs),
    ]

    partial_sums = pl.pallas_call(
        kernel,
        out_shape=jax.ShapeDtypeStruct((num_chunks, 8, _LANE), jnp.float32),
        grid_spec=pltpu.PrefetchScalarGridSpec(
            num_scalar_prefetch=0,
            grid=(num_chunks, steps),
            in_specs=in_specs,
            out_specs=pl.BlockSpec((1, 8, _LANE), lambda p, j: (p, 0, 0)),
        ),
        compiler_params=pltpu.CompilerParams(
            # TODO(synk): on v7x, verify with xprof that "parallel" actually
            # shards the leading axis across both TensorCores; if not, switch
            # that axis to pltpu.CORE_PARALLEL.
            dimension_semantics=("parallel", "arbitrary"),
            vmem_limit_bytes=vmem_limit,
        ),
    )(g2, a2)

    # Single cheap cross-lane reduce of the tiny partial-sum output.
    total = jnp.sum(partial_sums) + tail_sum
    return -(total / jnp.float32(n))


if __name__ == "__main__":
    key = jax.random.PRNGKey(0)
    k1, k2, k3, k4, k5, k6 = jax.random.split(key, 6)

    # 1) Discriminator-like outputs in (0, 1): NCHW (B, C, H, W), lane-aligned.
    shape = (2, 4, 16, 16)
    d_ground = jax.nn.sigmoid(jax.random.normal(k1, shape, dtype=jnp.float32))
    d_approx = jax.nn.sigmoid(jax.random.normal(k2, shape, dtype=jnp.float32))
    loss = jax.block_until_ready(cycle_cond_loss(d_ground, d_approx))
    ref = -jnp.mean(jnp.log(d_ground) + jnp.log(1.0 - d_approx))
    assert jnp.allclose(loss, ref, rtol=1e-5, atol=1e-5), (loss, ref)

    # 2) Ragged size: exercises the wrapper tail + pl.when-gated row mask.
    shape2 = (3, 5, 7, 11)   # 1155 elements, not a multiple of 128
    g2 = jax.nn.sigmoid(jax.random.normal(k3, shape2, dtype=jnp.float32))
    a2 = jax.nn.sigmoid(jax.random.normal(k4, shape2, dtype=jnp.float32))
    loss2 = jax.block_until_ready(cycle_cond_loss(g2, a2))
    ref2 = -jnp.mean(jnp.log(g2) + jnp.log(1.0 - a2))
    assert jnp.allclose(loss2, ref2, rtol=1e-5, atol=1e-5), (loss2, ref2)

    # 3) Multi-step grid (small tile forced): exercises the streamed,
    #    triple-buffered accumulation path.
    shape3 = (2, 4, 32, 128)
    g3 = jax.nn.sigmoid(jax.random.normal(k5, shape3, dtype=jnp.float32))
    a3 = jax.nn.sigmoid(jax.random.normal(k6, shape3, dtype=jnp.float32))
    loss3 = jax.block_until_ready(cycle_cond_loss(g3, a3, tile_rows=64))
    ref3 = -jnp.mean(jnp.log(g3) + jnp.log(1.0 - a3))
    assert jnp.allclose(loss3, ref3, rtol=1e-5, atol=1e-5), (loss3, ref3)

    print("KERNEL_OK")
</pallas_src>

<mosaic_0001>
module attributes {stable_mosaic.version = 11 : i64} {
  func.func @_cycle_cond_sum_kernel(%arg0: i32, %arg1: i32, %arg2: memref<16x128xf32, #tpu.memory_space<vmem>>, %arg3: memref<16x128xf32, #tpu.memory_space<vmem>>, %arg4: memref<1x8x128xf32, #tpu.memory_space<vmem>>) attributes {dimension_semantics = [#tpu.dimension_semantics<parallel>, #tpu.dimension_semantics<arbitrary>], iteration_bounds = array<i64: 1, 1>, scalar_prefetch = 0 : i64, scratch_operands = 0 : i64, tpu.core_type = #tpu.core_type<tc>, window_params = [{transform_indices = @transform_0, window_bounds = array<i64: 16, 128>}, {transform_indices = @transform_1, window_bounds = array<i64: 16, 128>}, {transform_indices = @transform_2, window_bounds = array<i64: 1, 8, 128>}]} {
    %c0_i32 = arith.constant 0 : i32
    %0 = arith.cmpi eq, %arg1, %c0_i32 : i32
    %1 = arith.extui %0 : i1 to i32
    %c0_i32_0 = arith.constant 0 : i32
    %2 = arith.cmpi ne, %1, %c0_i32_0 : i32
    scf.if %2 {
      %cst_11 = arith.constant 0.000000e+00 : f32
      %16 = vector.broadcast %cst_11 : f32 to vector<1x8x128xf32>
      %c0_12 = arith.constant 0 : index
      %c0_13 = arith.constant 0 : index
      %c0_14 = arith.constant 0 : index
      %17 = vector.load %arg4[%c0_12, %c0_13, %c0_14] : memref<1x8x128xf32, #tpu.memory_space<vmem>>, vector<1x8x128xf32>
      tpu.vector_store %arg4[%c0_12, %c0_13, %c0_14], %16 {strides = array<i32>} : memref<1x8x128xf32, #tpu.memory_space<vmem>>, vector<1x8x128xf32>,
    } else {
    }
    %c0 = arith.constant 0 : index
    %c0_1 = arith.constant 0 : index
    %3 = vector.load %arg2[%c0, %c0_1] : memref<16x128xf32, #tpu.memory_space<vmem>>, vector<16x128xf32>
    %c0_2 = arith.constant 0 : index
    %c0_3 = arith.constant 0 : index
    %4 = vector.load %arg3[%c0_2, %c0_3] : memref<16x128xf32, #tpu.memory_space<vmem>>, vector<16x128xf32>
    %5 = math.log %3 : vector<16x128xf32>
    %cst = arith.constant 1.000000e+00 : f32
    %6 = vector.broadcast %cst : f32 to vector<16x128xf32>
    %7 = arith.subf %6, %4 : vector<16x128xf32>
    %8 = math.log %7 : vector<16x128xf32>
    %9 = arith.addf %5, %8 : vector<16x128xf32>
    %c0_4 = arith.constant 0 : index
    %c0_5 = arith.constant 0 : index
    %c0_6 = arith.constant 0 : index
    %10 = vector.load %arg4[%c0_4, %c0_5, %c0_6] : memref<1x8x128xf32, #tpu.memory_space<vmem>>, vector<1x8x128xf32>
    %11 = vector.shape_cast %9 : vector<16x128xf32> to vector<2x8x128xf32>
    %cst_7 = arith.constant dense<0.000000e+00> : vector<8x128xf32>
    %12 = vector.multi_reduction <add>, %11, %cst_7 [0] : vector<2x8x128xf32> to vector<8x128xf32>
    %13 = vector.shape_cast %12 : vector<8x128xf32> to vector<1x8x128xf32>
    %14 = arith.addf %10, %13 : vector<1x8x128xf32>
    %c0_8 = arith.constant 0 : index
    %c0_9 = arith.constant 0 : index
    %c0_10 = arith.constant 0 : index
    %15 = vector.load %arg4[%c0_8, %c0_9, %c0_10] : memref<1x8x128xf32, #tpu.memory_space<vmem>>, vector<1x8x128xf32>
    tpu.vector_store %arg4[%c0_8, %c0_9, %c0_10], %14 {strides = array<i32>} : memref<1x8x128xf32, #tpu.memory_space<vmem>>, vector<1x8x128xf32>,
    return
  }
  func.func @transform_0(%arg0: i32, %arg1: i32) -> (i32, i32) {
    %c1_i32 = arith.constant 1 : i32
    %0 = arith.muli %arg0, %c1_i32 : i32
    %1 = arith.addi %0, %arg1 : i32
    %c0_i32 = arith.constant 0 : i32
    %2 = arith.minsi %1, %c0_i32 : i32
    %c0_i32_0 = arith.constant 0 : i32
    %c0_i32_1 = arith.constant 0 : i32
    return %2, %c0_i32_0 : i32, i32
  }
  func.func @transform_1(%arg0: i32, %arg1: i32) -> (i32, i32) {
    %c1_i32 = arith.constant 1 : i32
    %0 = arith.muli %arg0, %c1_i32 : i32
    %1 = arith.addi %0, %arg1 : i32
    %c0_i32 = arith.constant 0 : i32
    %2 = arith.minsi %1, %c0_i32 : i32
    %c0_i32_0 = arith.constant 0 : i32
    %c0_i32_1 = arith.constant 0 : i32
    return %2, %c0_i32_0 : i32, i32
  }
  func.func @transform_2(%arg0: i32, %arg1: i32) -> (i32, i32, i32) {
    %c0_i32 = arith.constant 0 : i32
    %c0_i32_0 = arith.constant 0 : i32
    %c0_i32_1 = arith.constant 0 : i32
    return %arg0, %c0_i32, %c0_i32_0 : i32, i32, i32
  }
}

</mosaic_0001>

<llo_original>
// kernel: tpu_custom_call.1
$region0: #{tpu_custom_call.1}
  #allocation0 [shape = 'u32[]', space=smem, size = 0x4, offset = 0x4, fixed_abs, tag = 'smem constant byte address 0x4 - core index']
  #allocation1 [shape = 'u32[72,128]{1,0:T(1,128)}', space=vmem, size = 0x9000, scoped, tag = 'internal scratch']
  %s0 = inlined_call_operand.hbm [shape: f32[16,128], index: 0, kind: input, shape index: {}]
  %s1 = inlined_call_operand.hbm [shape: f32[16,128], index: 1, kind: input, shape index: {}]
  %s2 = inlined_call_operand.hbm [shape: f32[1,8,128], index: 2, kind: output, shape index: {}]
  %s3 = sld [smem:[#allocation0]]
  $region30: #{tpu_custom_call.1} parent=0
    _
  %s5 = ssub.s32 1, %s3
  %s6 = scalar_select 0, %s5, %s3
  $region1: #{tpu_custom_call.1} parent=0
    #allocation2 [shape = 'u8[8192]{0}', space=vmem, size = 0x2000, scoped, tag = 'input window, operand 0, single buffered']
    #allocation3 [shape = 's32[1]{0}', space=sflag, size = 0x4, scoped, tag = 'scoped memory for tpu_custom_call.1']
    #allocation4 [shape = 's32[1]{0}', space=sflag, size = 0x4, scoped, tag = 'scoped memory for tpu_custom_call.1']
    #allocation5 [shape = 'u8[8192]{0}', space=vmem, size = 0x2000, scoped, tag = 'input window, operand 1, single buffered']
    #allocation6 [shape = 's32[1]{0}', space=sflag, size = 0x4, scoped, tag = 'scoped memory for tpu_custom_call.1']
    #allocation7 [shape = 'u8[4096]{0}', space=vmem, size = 0x1000, scoped, tag = 'output window, operand 0, single buffered']
    %7 = vsyncpa [#allocation3], 0
    %8 = vsyncpa [#allocation6], 0
    %9 = vsyncpa [#allocation4], 0
    // Predicated region
    $region2: #{tpu_custom_call.1} parent=1 // pred_check
      _
    $region3: #{tpu_custom_call.1} parent=1 // pred_check_branch
      %11 = sbr.rel (0) target = $region5
    $region4: #{tpu_custom_call.1} parent=1 // pred_region
      %s12 = sadd.s32 0, 0
      %p13 = scmp.lt.s32.totalorder %s12, 0
      %s14 = scalar_select %p13, %s12, 0
      %s15 = smul.u32 2, %s14
      %17 = vsyncadd [#allocation3], 0
      %s18 = smul.addr %s15, 8
      %s19 = scalar_lea.hbm %s0, %s18
      %s20 = sshll.u32 %s19, 4
      %s21 = int_to_ptr.hbm [resolvable:$true] %s20
      %s22 = sshll.u32 [#allocation2], 4
      %s23 = int_to_ptr.vmem [resolvable:$true] %s22
      %28 = dma.hbm_to_vmem [thread:$0]  %s21, 256, %s23, [#allocation3], 128, 128, 8
    $region5: #{tpu_custom_call.1} parent=1 // pred_fallthru
      _
    // Predicated region
    $region6: #{tpu_custom_call.1} parent=1 // pred_check
      _
    $region7: #{tpu_custom_call.1} parent=1 // pred_check_branch
      %30 = sbr.rel (0) target = $region9
    $region8: #{tpu_custom_call.1} parent=1 // pred_region
      %s31 = sadd.s32 0, 0
      %p32 = scmp.lt.s32.totalorder %s31, 0
      %s33 = scalar_select %p32, %s31, 0
      %s34 = smul.u32 2, %s33
      %36 = vsyncadd [#allocation6], 0
      %s37 = smul.addr %s34, 8
      %s38 = scalar_lea.hbm %s1, %s37
      %s39 = sshll.u32 %s38, 4
      %s40 = int_to_ptr.hbm [resolvable:$true] %s39
      %s41 = sshll.u32 [#allocation5], 4
      %s42 = int_to_ptr.vmem [resolvable:$true] %s41
      %47 = dma.hbm_to_vmem [thread:$0]  %s40, 256, %s42, [#allocation6], 128, 128, 8
    $region9: #{tpu_custom_call.1} parent=1 // pred_fallthru
      _
    // Predicated region
    $region10: #{tpu_custom_call.1} parent=1 // pred_check
      _
    $region11: #{tpu_custom_call.1} parent=1 // pred_check_branch
      %49 = sbr.rel (0) target = $region13
    $region12: #{tpu_custom_call.1} parent=1 // pred_region
      %51 = dma.done [#allocation3], 256
    $region13: #{tpu_custom_call.1} parent=1 // pred_fallthru
      _
    // Predicated region
    $region14: #{tpu_custom_call.1} parent=1 // pred_check
      _
    $region15: #{tpu_custom_call.1} parent=1 // pred_check_branch
      %53 = sbr.rel (0) target = $region17
    $region16: #{tpu_custom_call.1} parent=1 // pred_region
      %55 = dma.done [#allocation6], 256
    $region17: #{tpu_custom_call.1} parent=1 // pred_fallthru
      _
    %s56 = sadd.s32 0, 0
    %p57 = scmp.lt.s32.totalorder %s56, 0
    %s58 = scalar_select %p57, %s56, 0
    %s59 = smul.u32 2, %s58
    %s60 = sadd.s32 0, 0
    %p61 = scmp.lt.s32.totalorder %s60, 0
    %s62 = scalar_select %p61, %s60, 0
    %s63 = smul.u32 2, %s62
    %p64 = scmp.eq.s32.totalorder 0, 0
    // Predicated region
    $region18: #{tpu_custom_call.1} parent=1 // pred_check
      %p65 = pneg %p64
    $region19: #{tpu_custom_call.1} parent=1 // pred_check_branch
      %67 = sbr.rel (%p65) target = $region21
    $region20: #{tpu_custom_call.1} parent=1 // pred_region
      %68 = vst [vmem:[#allocation7] sm:$0xff] 0.0
    $region21: #{tpu_custom_call.1} parent=1 // pred_fallthru
      _
    %v69 = vld [vmem:[#allocation2] sm:$0xff]
    %v70 = vld [vmem:[#allocation2 + $0x8] sm:$0xff]
    %v71 = vld [vmem:[#allocation5] sm:$0xff]
    %v72 = vld [vmem:[#allocation5 + $0x8] sm:$0xff]
    %v73 = vlog2.pop %v69
    %v74 = vmul.f32 %v73, 0.6931472
    %v75 = vlog2.pop %v70
    %v76 = vmul.f32 %v75, 0.6931472
    %v77 = vsub.f32 1.0, %v71
    %v78 = vsub.f32 1.0, %v72
    %v79 = vlog2.pop %v77
    %v80 = vmul.f32 %v79, 0.6931472
    %v81 = vlog2.pop %v78
    %v82 = vmul.f32 %v81, 0.6931472
    %v83 = vadd.f32 %v74, %v80
    %v84 = vadd.f32 %v76, %v82
    %v85 = vld [vmem:[#allocation7] sm:$0xff]
    %v86 = vadd.f32 %v83, %v84
    %v87 = vadd.f32 %v85, %v86
    %88 = vst [vmem:[#allocation7] sm:$0xff] %v87
    // Predicated region
    $region22: #{tpu_custom_call.1} parent=1 // pred_check
      _
    $region23: #{tpu_custom_call.1} parent=1 // pred_check_branch
      %90 = sbr.rel (0) target = $region25
    $region24: #{tpu_custom_call.1} parent=1 // pred_region
      %92 = vsyncadd [#allocation4], 0
      %s94 = sshll.u32 [#allocation7], 4
      %s95 = int_to_ptr.vmem [resolvable:$true] %s94
      %s96 = sshll.u32 %s2, 4
      %s97 = int_to_ptr.hbm [resolvable:$true] %s96
      %99 = dma.vmem_to_hbm [thread:$0]  %s95, 128, %s97, [#allocation4]
    $region25: #{tpu_custom_call.1} parent=1 // pred_fallthru
      _
    // Predicated region
    $region26: #{tpu_custom_call.1} parent=1 // pred_check
      _
    $region27: #{tpu_custom_call.1} parent=1 // pred_check_branch
      %101 = sbr.rel (0) target = $region29
    $region28: #{tpu_custom_call.1} parent=1 // pred_region
      %103 = dma.done [#allocation4], 128
    $region29: #{tpu_custom_call.1} parent=1 // pred_fallthru
      _
    %104 = vsyncpa [#allocation3], 1
    %105 = vsyncpa [#allocation6], 1
    %106 = vsyncpa [#allocation4], 1

</llo_original>
